<compile_context>
chip_gen: v7x
topology: tpu7x:2x2x1
jax: 0.10.0
libtpu: 0.0.40
codegen_flags: <defaults>
</compile_context>

<pallas_src>
import functools

import jax
import jax.numpy as jnp
from jax import lax
from jax.experimental import pallas as pl
from jax.experimental.pallas import tpu as pltpu


def _round_up(x, m):
    return (x + m - 1) // m * m


def _silu(x):
    return x * jax.nn.sigmoid(x)


# ---------------------------------------------------------------------------
# Kernel
# ---------------------------------------------------------------------------
def skill_qnet_kernel(
    xin_ref,                      # (T, Din)  packed obs || skill
    w1_ref, b1_ref,               # fc1: (Din, H), (1, H)
    w2s_ref, w2x_ref, b2_ref,     # fc2: (Din, H) zero obs rows, (H, H), (1, H)
    w3_ref, b3_ref,               # fc3: (H, H//2), (1, H//2)
    w4_ref, b4_ref,               # out: (H//2, A), (1, A)
    out_ref,                      # (T, A)
    *, obs_dim, skill_scale,
):
    f32 = jnp.float32
    cdt = w1_ref.dtype            # MXU operand dtype (bf16 or f32)

    # Packed input; elementwise math in f32 on the VPU/EUP (v5e has no bf16 VPU).
    x = xin_ref[...].astype(f32)                                  # (T, Din)
    col = lax.broadcasted_iota(jnp.int32, x.shape, 1)
    is_skill = col >= obs_dim
    # obs columns pass through; skill columns get tanh(skill * skill_scale).
    x_t = jnp.where(is_skill, jnp.tanh(x * skill_scale), x)
    x_c = x_t.astype(cdt)

    # fc1 on cat([obs, tanh(skill)]): single dot with the concatenated weight.
    h1 = _silu(jnp.dot(x_c, w1_ref[...], preferred_element_type=f32)
               + b1_ref[...])

    # fc2 on cat([h1, tanh(skill)]): split matmul.  w2s_ref has zero rows for
    # the obs columns, so x_c @ w2s_ref == tanh(skill) @ w2s exactly.
    sk2 = jnp.dot(x_c, w2s_ref[...], preferred_element_type=f32)
    h2 = _silu(jnp.dot(h1.astype(cdt), w2x_ref[...], preferred_element_type=f32)
               + sk2 + b2_ref[...])

    # fc3
    h3 = _silu(jnp.dot(h2.astype(cdt), w3_ref[...], preferred_element_type=f32)
               + b3_ref[...])

    # out: native-width (T, n_actions) store.
    out_ref[...] = (
        jnp.dot(h3.astype(cdt), w4_ref[...], preferred_element_type=f32)
        + b4_ref[...]
    ).astype(out_ref.dtype)


# ---------------------------------------------------------------------------
# Parameter packing: native widths, zero-extended w2s rows, dtype cast.
# ---------------------------------------------------------------------------
def pack_params(params, obs_dim, skill_dim, n_actions, hidden_dim,
                compute_dtype=jnp.bfloat16):
    H = hidden_dim
    Din = obs_dim + skill_dim
    wdt = compute_dtype

    # fc1 weight on the concatenated input (rows: obs then skill).
    w1 = jnp.concatenate([params["w1o"], params["w1s"]], axis=0)       # (Din, H)
    # fc2 skill weight, zero-extended over the obs rows (no lane slicing needed).
    w2s_ext = jnp.concatenate(
        [jnp.zeros((obs_dim, H), jnp.float32), params["w2s"]], axis=0)  # (Din, H)

    packed = {
        "w1": w1.astype(wdt),
        "b1": params["b1"].astype(jnp.float32),
        "w2s": w2s_ext.astype(wdt),
        "w2x": params["w2x"].astype(wdt),
        "b2": params["b2"].astype(jnp.float32),
        "w3": params["w3"].astype(wdt),
        "b3": params["b3"].astype(jnp.float32),
        "w4": params["w4"].astype(wdt),
        "b4": params["b4"].astype(jnp.float32),
    }
    dims = dict(obs_dim=obs_dim, skill_dim=skill_dim, n_actions=n_actions,
                hidden=H, Din=Din, compute_dtype=wdt)
    return packed, dims


# ---------------------------------------------------------------------------
# Wrapper
# ---------------------------------------------------------------------------
def skill_qnet_forward(obs, skill, packed, dims, *, batch_tile=None,
                       skill_scale=3.0):
    B = obs.shape[0]
    Din, H, A = dims["Din"], dims["hidden"], dims["n_actions"]
    cdt = dims["compute_dtype"]

    # Batch-tile heuristic:
    #  - small/medium batches: one big grid step (per-step overhead dominates
    #    tiny tiles; mem-bound roofline wants >=512-row tiles anyway),
    #  - very large batches: cap at 1024 rows and guarantee >=2 "parallel"
    #    steps so both v7x TensorCores get work.
    if batch_tile is None:
        if B <= 2048:
            batch_tile = _round_up(max(B, 1), 8)
        else:
            batch_tile = min(1024, _round_up((B + 1) // 2, 8))
    batch_tile = max(8, _round_up(batch_tile, 8))
    Bp = _round_up(B, batch_tile)

    # Pack obs || skill into one native-width array in the compute dtype.
    # Only the batch dim is (possibly) padded.
    xin = jnp.concatenate([obs, skill], axis=-1).astype(cdt)
    if Bp != B:
        xin = jnp.pad(xin, ((0, Bp - B), (0, 0)))

    grid = (Bp // batch_tile,)
    batch_map = lambda i: (i, 0)
    fixed = lambda i: (0, 0)

    in_specs = [
        pl.BlockSpec((batch_tile, Din), batch_map),   # xin
        pl.BlockSpec((Din, H), fixed),                # w1
        pl.BlockSpec((1, H), fixed),                  # b1
        pl.BlockSpec((Din, H), fixed),                # w2s (zero obs rows)
        pl.BlockSpec((H, H), fixed),                  # w2x
        pl.BlockSpec((1, H), fixed),                  # b2
        pl.BlockSpec((H, H // 2), fixed),             # w3
        pl.BlockSpec((1, H // 2), fixed),             # b3
        pl.BlockSpec((H // 2, A), fixed),             # w4
        pl.BlockSpec((1, A), fixed),                  # b4
    ]
    out_specs = pl.BlockSpec((batch_tile, A), batch_map)

    # Advisory cost estimate for XLA scheduling of the tiny custom call.
    flops = 2 * Bp * (Din * H + Din * H + H * H + H * (H // 2) + (H // 2) * A)
    transcendentals = Bp * (Din + 2 * H + H // 2)
    bytes_accessed = (int(xin.size) * jnp.dtype(cdt).itemsize
                      + sum(int(v.size) * v.dtype.itemsize for v in packed.values())
                      + Bp * A * 4)
    cost = pl.CostEstimate(flops=int(flops),
                           transcendentals=int(transcendentals),
                           bytes_accessed=int(bytes_accessed))

    kernel = functools.partial(skill_qnet_kernel,
                               obs_dim=dims["obs_dim"],
                               skill_scale=float(skill_scale))

    out = pl.pallas_call(
        kernel,
        out_shape=jax.ShapeDtypeStruct((Bp, A), jnp.float32),
        grid_spec=pltpu.PrefetchScalarGridSpec(
            num_scalar_prefetch=0,
            grid=grid,
            in_specs=in_specs,
            out_specs=out_specs,
        ),
        compiler_params=pltpu.CompilerParams(
            dimension_semantics=("parallel",),
        ),
        cost_estimate=cost,
    )(
        xin,
        packed["w1"], packed["b1"],
        packed["w2s"], packed["w2x"], packed["b2"],
        packed["w3"], packed["b3"],
        packed["w4"], packed["b4"],
    )
    if Bp != B:
        out = out[:B]
    return out


# ---------------------------------------------------------------------------
# Init + reference
# ---------------------------------------------------------------------------
def init_params(key, obs_dim, skill_dim, n_actions, hidden_dim):
    """Deterministic synthetic init (PyTorch Linear-like uniform fan-in bound)."""
    ks = jax.random.split(key, 4)

    def lin(k, fan_in, fan_out):
        bound = 1.0 / jnp.sqrt(fan_in)
        kw, kb = jax.random.split(k)
        w = jax.random.uniform(kw, (fan_in, fan_out), jnp.float32, -bound, bound)
        b = jax.random.uniform(kb, (1, fan_out), jnp.float32, -bound, bound)
        return w, b

    H = hidden_dim
    w1, b1 = lin(ks[0], obs_dim + skill_dim, H)   # fc1: in = obs_dim + skill_dim
    w2, b2 = lin(ks[1], H + skill_dim, H)         # fc2: in = hidden_dim + skill_dim
    w3, b3 = lin(ks[2], H, H // 2)                # fc3
    w4, b4 = lin(ks[3], H // 2, n_actions)        # out

    return {
        "w1o": w1[:obs_dim], "w1s": w1[obs_dim:], "b1": b1,
        "w2x": w2[:H], "w2s": w2[H:], "b2": b2,
        "w3": w3, "b3": b3,
        "w4": w4, "b4": b4,
    }


def reference_forward(obs, skill, params, compute_dtype=jnp.float32):
    """Pure-JAX reference matching the PyTorch module semantics.

    compute_dtype mirrors the kernel: inputs are stored in that dtype, dot
    operands are cast to it, accumulation and elementwise math stay f32.
    """
    cdt = compute_dtype
    obs = obs.astype(cdt).astype(jnp.float32)
    skill = skill.astype(cdt).astype(jnp.float32)

    def mm(x, w):
        return jnp.dot(x.astype(cdt), w.astype(cdt),
                       preferred_element_type=jnp.float32)

    skill_t = jnp.tanh(skill * 3.0)
    w1 = jnp.concatenate([params["w1o"], params["w1s"]], axis=0)
    x = jnp.concatenate([obs, skill_t], axis=-1)
    x = jax.nn.silu(mm(x, w1) + params["b1"])
    w2 = jnp.concatenate([params["w2x"], params["w2s"]], axis=0)
    x = jnp.concatenate([x, skill_t], axis=-1)
    x = jax.nn.silu(mm(x, w2) + params["b2"])
    x = jax.nn.silu(mm(x, params["w3"]) + params["b3"])
    return mm(x, params["w4"]) + params["b4"]


if __name__ == "__main__":
    key = jax.random.PRNGKey(0)
    k_obs, k_skill, k_params, k_obs2, k_skill2 = jax.random.split(key, 5)

    # Small shapes consistent with the module.
    B, OBS_DIM, SKILL_DIM, N_ACTIONS, HIDDEN = 8, 24, 8, 6, 32

    obs = jax.random.normal(k_obs, (B, OBS_DIM), jnp.float32)
    skill = jax.random.normal(k_skill, (B, SKILL_DIM), jnp.float32)
    params = init_params(k_params, OBS_DIM, SKILL_DIM, N_ACTIONS, HIDDEN)

    # 1) f32 compute path: close vs pure-f32 reference.
    packed_f32, dims_f32 = pack_params(
        params, OBS_DIM, SKILL_DIM, N_ACTIONS, HIDDEN, compute_dtype=jnp.float32)
    out_f32 = jax.block_until_ready(skill_qnet_forward(obs, skill, packed_f32, dims_f32))
    ref_f32 = reference_forward(obs, skill, params, compute_dtype=jnp.float32)
    assert out_f32.shape == (B, N_ACTIONS)
    assert jnp.allclose(out_f32, ref_f32, atol=1e-4, rtol=1e-4), "f32 path mismatch"

    # 2) bf16 MXU-operand path (perf default): compare vs bf16-operand reference.
    packed_bf, dims_bf = pack_params(
        params, OBS_DIM, SKILL_DIM, N_ACTIONS, HIDDEN, compute_dtype=jnp.bfloat16)
    out_bf = jax.block_until_ready(skill_qnet_forward(obs, skill, packed_bf, dims_bf))
    ref_bf = reference_forward(obs, skill, params, compute_dtype=jnp.bfloat16)
    assert out_bf.shape == (B, N_ACTIONS)
    assert jnp.allclose(out_bf, ref_bf, atol=5e-3, rtol=5e-3), "bf16 path mismatch"

    # 3) Larger ragged batch -> multi-step grid + batch padding path.
    B2 = 200
    obs2 = jax.random.normal(k_obs2, (B2, OBS_DIM), jnp.float32)
    skill2 = jax.random.normal(k_skill2, (B2, SKILL_DIM), jnp.float32)
    out2 = jax.block_until_ready(
        skill_qnet_forward(obs2, skill2, packed_bf, dims_bf, batch_tile=128))
    ref2 = reference_forward(obs2, skill2, params, compute_dtype=jnp.bfloat16)
    assert out2.shape == (B2, N_ACTIONS)
    assert jnp.allclose(out2, ref2, atol=5e-3, rtol=5e-3), "ragged-batch mismatch"

    print("KERNEL_OK")
</pallas_src>

<mosaic_0001>
module attributes {stable_mosaic.version = 11 : i64} {
  func.func @skill_qnet_kernel(%arg0: i32, %arg1: memref<8x32xf32, #tpu.memory_space<vmem>>, %arg2: memref<32x32xf32, #tpu.memory_space<vmem>>, %arg3: memref<1x32xf32, #tpu.memory_space<vmem>>, %arg4: memref<32x32xf32, #tpu.memory_space<vmem>>, %arg5: memref<32x32xf32, #tpu.memory_space<vmem>>, %arg6: memref<1x32xf32, #tpu.memory_space<vmem>>, %arg7: memref<32x16xf32, #tpu.memory_space<vmem>>, %arg8: memref<1x16xf32, #tpu.memory_space<vmem>>, %arg9: memref<16x6xf32, #tpu.memory_space<vmem>>, %arg10: memref<1x6xf32, #tpu.memory_space<vmem>>, %arg11: memref<8x6xf32, #tpu.memory_space<vmem>>) attributes {dimension_semantics = [#tpu.dimension_semantics<parallel>], iteration_bounds = array<i64: 1>, scalar_prefetch = 0 : i64, scratch_operands = 0 : i64, tpu.core_type = #tpu.core_type<tc>, window_params = [{transform_indices = @transform_0, window_bounds = array<i64: 8, 32>}, {pipeline_mode = #tpu.pipeline_mode<synchronous>, transform_indices = @transform_1, window_bounds = array<i64: 32, 32>}, {pipeline_mode = #tpu.pipeline_mode<synchronous>, transform_indices = @transform_2, window_bounds = array<i64: 1, 32>}, {pipeline_mode = #tpu.pipeline_mode<synchronous>, transform_indices = @transform_3, window_bounds = array<i64: 32, 32>}, {pipeline_mode = #tpu.pipeline_mode<synchronous>, transform_indices = @transform_4, window_bounds = array<i64: 32, 32>}, {pipeline_mode = #tpu.pipeline_mode<synchronous>, transform_indices = @transform_5, window_bounds = array<i64: 1, 32>}, {pipeline_mode = #tpu.pipeline_mode<synchronous>, transform_indices = @transform_6, window_bounds = array<i64: 32, 16>}, {pipeline_mode = #tpu.pipeline_mode<synchronous>, transform_indices = @transform_7, window_bounds = array<i64: 1, 16>}, {pipeline_mode = #tpu.pipeline_mode<synchronous>, transform_indices = @transform_8, window_bounds = array<i64: 16, 6>}, {pipeline_mode = #tpu.pipeline_mode<synchronous>, transform_indices = @transform_9, window_bounds = array<i64: 1, 6>}, {transform_indices = @transform_10, window_bounds = array<i64: 8, 6>}]} {
    %c0 = arith.constant 0 : index
    %c0_0 = arith.constant 0 : index
    %0 = vector.load %arg1[%c0, %c0_0] : memref<8x32xf32, #tpu.memory_space<vmem>>, vector<8x32xf32>
    %1 = tpu.iota {dimensions = array<i32: 1>} : vector<8x32xi32>
    %c24_i32 = arith.constant 24 : i32
    %2 = vector.broadcast %c24_i32 : i32 to vector<8x32xi32>
    %3 = arith.cmpi sge, %1, %2 : vector<8x32xi32>
    %cst = arith.constant 3.000000e+00 : f32
    %4 = vector.broadcast %cst : f32 to vector<8x32xf32>
    %5 = arith.mulf %0, %4 : vector<8x32xf32>
    %6 = math.tanh %5 : vector<8x32xf32>
    %7 = arith.select %3, %6, %0 : vector<8x32xi1>, vector<8x32xf32>
    %c0_1 = arith.constant 0 : index
    %c0_2 = arith.constant 0 : index
    %8 = vector.load %arg2[%c0_1, %c0_2] : memref<32x32xf32, #tpu.memory_space<vmem>>, vector<32x32xf32>
    %cst_3 = arith.constant dense<0.000000e+00> : vector<8x32xf32>
    %9 = tpu.matmul %7, %8, %cst_3 {dimension_numbers = #tpu.dot_dimension_numbers<[1], [0], [0], [1], [0, 0, 1, 1], [], []>} : vector<8x32xf32>, vector<32x32xf32>, vector<8x32xf32> -> vector<8x32xf32>
    %c0_4 = arith.constant 0 : index
    %c0_5 = arith.constant 0 : index
    %10 = vector.load %arg3[%c0_4, %c0_5] : memref<1x32xf32, #tpu.memory_space<vmem>>, vector<1x32xf32>
    %11 = vector.broadcast %10 : vector<1x32xf32> to vector<8x32xf32>
    %12 = arith.addf %9, %11 : vector<8x32xf32>
    %13 = arith.negf %12 : vector<8x32xf32>
    %14 = math.exp %13 : vector<8x32xf32>
    %cst_6 = arith.constant 1.000000e+00 : f32
    %15 = vector.broadcast %cst_6 : f32 to vector<8x32xf32>
    %16 = arith.addf %15, %14 : vector<8x32xf32>
    %17 = arith.divf %15, %16 : vector<8x32xf32>
    %18 = arith.mulf %12, %17 : vector<8x32xf32>
    %c0_7 = arith.constant 0 : index
    %c0_8 = arith.constant 0 : index
    %19 = vector.load %arg4[%c0_7, %c0_8] : memref<32x32xf32, #tpu.memory_space<vmem>>, vector<32x32xf32>
    %cst_9 = arith.constant dense<0.000000e+00> : vector<8x32xf32>
    %20 = tpu.matmul %7, %19, %cst_9 {dimension_numbers = #tpu.dot_dimension_numbers<[1], [0], [0], [1], [0, 0, 1, 1], [], []>} : vector<8x32xf32>, vector<32x32xf32>, vector<8x32xf32> -> vector<8x32xf32>
    %c0_10 = arith.constant 0 : index
    %c0_11 = arith.constant 0 : index
    %21 = vector.load %arg5[%c0_10, %c0_11] : memref<32x32xf32, #tpu.memory_space<vmem>>, vector<32x32xf32>
    %cst_12 = arith.constant dense<0.000000e+00> : vector<8x32xf32>
    %22 = tpu.matmul %18, %21, %cst_12 {dimension_numbers = #tpu.dot_dimension_numbers<[1], [0], [0], [1], [0, 0, 1, 1], [], []>} : vector<8x32xf32>, vector<32x32xf32>, vector<8x32xf32> -> vector<8x32xf32>
    %23 = arith.addf %22, %20 : vector<8x32xf32>
    %c0_13 = arith.constant 0 : index
    %c0_14 = arith.constant 0 : index
    %24 = vector.load %arg6[%c0_13, %c0_14] : memref<1x32xf32, #tpu.memory_space<vmem>>, vector<1x32xf32>
    %25 = vector.broadcast %24 : vector<1x32xf32> to vector<8x32xf32>
    %26 = arith.addf %23, %25 : vector<8x32xf32>
    %27 = arith.negf %26 : vector<8x32xf32>
    %28 = math.exp %27 : vector<8x32xf32>
    %cst_15 = arith.constant 1.000000e+00 : f32
    %29 = vector.broadcast %cst_15 : f32 to vector<8x32xf32>
    %30 = arith.addf %29, %28 : vector<8x32xf32>
    %31 = arith.divf %29, %30 : vector<8x32xf32>
    %32 = arith.mulf %26, %31 : vector<8x32xf32>
    %c0_16 = arith.constant 0 : index
    %c0_17 = arith.constant 0 : index
    %33 = vector.load %arg7[%c0_16, %c0_17] : memref<32x16xf32, #tpu.memory_space<vmem>>, vector<32x16xf32>
    %cst_18 = arith.constant dense<0.000000e+00> : vector<8x16xf32>
    %34 = tpu.matmul %32, %33, %cst_18 {dimension_numbers = #tpu.dot_dimension_numbers<[1], [0], [0], [1], [0, 0, 1, 1], [], []>} : vector<8x32xf32>, vector<32x16xf32>, vector<8x16xf32> -> vector<8x16xf32>
    %c0_19 = arith.constant 0 : index
    %c0_20 = arith.constant 0 : index
    %35 = vector.load %arg8[%c0_19, %c0_20] : memref<1x16xf32, #tpu.memory_space<vmem>>, vector<1x16xf32>
    %36 = vector.broadcast %35 : vector<1x16xf32> to vector<8x16xf32>
    %37 = arith.addf %34, %36 : vector<8x16xf32>
    %38 = arith.negf %37 : vector<8x16xf32>
    %39 = math.exp %38 : vector<8x16xf32>
    %cst_21 = arith.constant 1.000000e+00 : f32
    %40 = vector.broadcast %cst_21 : f32 to vector<8x16xf32>
    %41 = arith.addf %40, %39 : vector<8x16xf32>
    %42 = arith.divf %40, %41 : vector<8x16xf32>
    %43 = arith.mulf %37, %42 : vector<8x16xf32>
    %c0_22 = arith.constant 0 : index
    %c0_23 = arith.constant 0 : index
    %44 = vector.load %arg9[%c0_22, %c0_23] : memref<16x6xf32, #tpu.memory_space<vmem>>, vector<16x6xf32>
    %cst_24 = arith.constant dense<0.000000e+00> : vector<8x6xf32>
    %45 = tpu.matmul %43, %44, %cst_24 {dimension_numbers = #tpu.dot_dimension_numbers<[1], [0], [0], [1], [0, 0, 1, 1], [], []>} : vector<8x16xf32>, vector<16x6xf32>, vector<8x6xf32> -> vector<8x6xf32>
    %c0_25 = arith.constant 0 : index
    %c0_26 = arith.constant 0 : index
    %46 = vector.load %arg10[%c0_25, %c0_26] : memref<1x6xf32, #tpu.memory_space<vmem>>, vector<1x6xf32>
    %47 = vector.broadcast %46 : vector<1x6xf32> to vector<8x6xf32>
    %48 = arith.addf %45, %47 : vector<8x6xf32>
    %c0_27 = arith.constant 0 : index
    %c0_28 = arith.constant 0 : index
    %49 = vector.load %arg11[%c0_27, %c0_28] : memref<8x6xf32, #tpu.memory_space<vmem>>, vector<8x6xf32>
    tpu.vector_store %arg11[%c0_27, %c0_28], %48 {strides = array<i32>} : memref<8x6xf32, #tpu.memory_space<vmem>>, vector<8x6xf32>,
    return
  }
  func.func @transform_0(%arg0: i32) -> (i32, i32) {
    %c0_i32 = arith.constant 0 : i32
    %c0_i32_0 = arith.constant 0 : i32
    return %arg0, %c0_i32 : i32, i32
  }
  func.func @transform_1(%arg0: i32) -> (i32, i32) {
    %c0_i32 = arith.constant 0 : i32
    %c0_i32_0 = arith.constant 0 : i32
    %c0_i32_1 = arith.constant 0 : i32
    return %c0_i32, %c0_i32_0 : i32, i32
  }
  func.func @transform_2(%arg0: i32) -> (i32, i32) {
    %c0_i32 = arith.constant 0 : i32
    %c0_i32_0 = arith.constant 0 : i32
    %c0_i32_1 = arith.constant 0 : i32
    return %c0_i32, %c0_i32_0 : i32, i32
  }
  func.func @transform_3(%arg0: i32) -> (i32, i32) {
    %c0_i32 = arith.constant 0 : i32
    %c0_i32_0 = arith.constant 0 : i32
    %c0_i32_1 = arith.constant 0 : i32
    return %c0_i32, %c0_i32_0 : i32, i32
  }
  func.func @transform_4(%arg0: i32) -> (i32, i32) {
    %c0_i32 = arith.constant 0 : i32
    %c0_i32_0 = arith.constant 0 : i32
    %c0_i32_1 = arith.constant 0 : i32
    return %c0_i32, %c0_i32_0 : i32, i32
  }
  func.func @transform_5(%arg0: i32) -> (i32, i32) {
    %c0_i32 = arith.constant 0 : i32
    %c0_i32_0 = arith.constant 0 : i32
    %c0_i32_1 = arith.constant 0 : i32
    return %c0_i32, %c0_i32_0 : i32, i32
  }
  func.func @transform_6(%arg0: i32) -> (i32, i32) {
    %c0_i32 = arith.constant 0 : i32
    %c0_i32_0 = arith.constant 0 : i32
    %c0_i32_1 = arith.constant 0 : i32
    return %c0_i32, %c0_i32_0 : i32, i32
  }
  func.func @transform_7(%arg0: i32) -> (i32, i32) {
    %c0_i32 = arith.constant 0 : i32
    %c0_i32_0 = arith.constant 0 : i32
    %c0_i32_1 = arith.constant 0 : i32
    return %c0_i32, %c0_i32_0 : i32, i32
  }
  func.func @transform_8(%arg0: i32) -> (i32, i32) {
    %c0_i32 = arith.constant 0 : i32
    %c0_i32_0 = arith.constant 0 : i32
    %c0_i32_1 = arith.constant 0 : i32
    return %c0_i32, %c0_i32_0 : i32, i32
  }
  func.func @transform_9(%arg0: i32) -> (i32, i32) {
    %c0_i32 = arith.constant 0 : i32
    %c0_i32_0 = arith.constant 0 : i32
    %c0_i32_1 = arith.constant 0 : i32
    return %c0_i32, %c0_i32_0 : i32, i32
  }
  func.func @transform_10(%arg0: i32) -> (i32, i32) {
    %c0_i32 = arith.constant 0 : i32
    %c0_i32_0 = arith.constant 0 : i32
    return %arg0, %c0_i32 : i32, i32
  }
}

</mosaic_0001>

<llo_original>
// kernel: tpu_custom_call.1
$region0: #{tpu_custom_call.1}
  #allocation0 [shape = 'u32[]', space=smem, size = 0x4, offset = 0x4, fixed_abs, tag = 'smem constant byte address 0x4 - core index']
  #allocation1 [shape = 'u32[144,128]{1,0:T(1,128)}', space=vmem, size = 0x12000, scoped, tag = 'internal scratch']
  %s0 = inlined_call_operand.hbm [shape: f32[8,32], index: 0, kind: input, shape index: {}]
  %s1 = inlined_call_operand.vmem [shape: f32[32,32], index: 1, kind: input, shape index: {}]
  %s2 = inlined_call_operand.vmem [shape: f32[1,32], index: 2, kind: input, shape index: {}]
  %s3 = inlined_call_operand.vmem [shape: f32[32,32], index: 3, kind: input, shape index: {}]
  %s4 = inlined_call_operand.hbm [shape: f32[32,32], index: 4, kind: input, shape index: {}]
  %s5 = inlined_call_operand.vmem [shape: f32[1,32], index: 5, kind: input, shape index: {}]
  %s6 = inlined_call_operand.vmem [shape: f32[32,16], index: 6, kind: input, shape index: {}]
  %s7 = inlined_call_operand.vmem [shape: f32[1,16], index: 7, kind: input, shape index: {}]
  %s8 = inlined_call_operand.vmem [shape: f32[16,6], index: 8, kind: input, shape index: {}]
  %s9 = inlined_call_operand.vmem [shape: f32[1,6], index: 9, kind: input, shape index: {}]
  %s10 = inlined_call_operand.hbm [shape: f32[8,6], index: 10, kind: output, shape index: {}]
  %s11 = sld [smem:[#allocation0]]
  $region58: #{tpu_custom_call.1} parent=0
    _
  %s13 = ssub.s32 1, %s11
  %s14 = scalar_select 0, %s13, %s11
  $region1: #{tpu_custom_call.1} parent=0
    #allocation2 [shape = 'u8[4096]{0}', space=vmem, size = 0x1000, scoped, tag = 'input window, operand 0, single buffered']
    #allocation3 [shape = 's32[1]{0}', space=sflag, size = 0x4, scoped, tag = 'scoped memory for tpu_custom_call.1']
    #allocation4 [shape = 's32[1]{0}', space=sflag, size = 0x4, scoped, tag = 'scoped memory for tpu_custom_call.1']
    #allocation5 [shape = 'u8[16384]{0}', space=vmem, size = 0x4000, scoped, tag = 'input window, operand 4, single buffered']
    #allocation6 [shape = 's32[1]{0}', space=sflag, size = 0x4, scoped, tag = 'scoped memory for tpu_custom_call.1']
    #allocation7 [shape = 'u8[4096]{0}', space=vmem, size = 0x1000, scoped, tag = 'output window, operand 0, single buffered']
    %15 = vsyncpa [#allocation3], 0
    %16 = vsyncpa [#allocation6], 0
    %17 = vsyncpa [#allocation4], 0
    // Predicated region
    $region2: #{tpu_custom_call.1} parent=1 // pred_check
      _
    $region3: #{tpu_custom_call.1} parent=1 // pred_check_branch
      %19 = sbr.rel (0) target = $region5
    $region4: #{tpu_custom_call.1} parent=1 // pred_region
      %s21 = ssub.s32 128, 128
      %22 = vsyncadd [#allocation3], %s21
      %s24 = sshll.u32 [#allocation2], 4
      %s25 = int_to_ptr.vmem [resolvable:$true] %s24
      %27 = dma.hbm_to_vmem [thread:$0]  %s0, 128, %s25, [#allocation3]
    $region5: #{tpu_custom_call.1} parent=1 // pred_fallthru
      _
    // Predicated region
    $region6: #{tpu_custom_call.1} parent=1 // pred_check
      _
    $region7: #{tpu_custom_call.1} parent=1 // pred_check_branch
      %29 = sbr.rel (0) target = $region9
    $region8: #{tpu_custom_call.1} parent=1 // pred_region
      _
    $region9: #{tpu_custom_call.1} parent=1 // pred_fallthru
      _
    // Predicated region
    $region10: #{tpu_custom_call.1} parent=1 // pred_check
      _
    $region11: #{tpu_custom_call.1} parent=1 // pred_check_branch
      %31 = sbr.rel (0) target = $region13
    $region12: #{tpu_custom_call.1} parent=1 // pred_region
      _
    $region13: #{tpu_custom_call.1} parent=1 // pred_fallthru
      _
    // Predicated region
    $region14: #{tpu_custom_call.1} parent=1 // pred_check
      _
    $region15: #{tpu_custom_call.1} parent=1 // pred_check_branch
      %33 = sbr.rel (0) target = $region17
    $region16: #{tpu_custom_call.1} parent=1 // pred_region
      _
    $region17: #{tpu_custom_call.1} parent=1 // pred_fallthru
      _
    // Predicated region
    $region18: #{tpu_custom_call.1} parent=1 // pred_check
      _
    $region19: #{tpu_custom_call.1} parent=1 // pred_check_branch
      %35 = sbr.rel (0) target = $region21
    $region20: #{tpu_custom_call.1} parent=1 // pred_region
      %s37 = ssub.s32 512, 512
      %38 = vsyncadd [#allocation6], %s37
      %s39 = sshll.u32 [#allocation5], 4
      %s40 = int_to_ptr.vmem [resolvable:$true] %s39
      %45 = dma.hbm_to_vmem [thread:$0]  %s4, 512, %s40, [#allocation6], 128, 128, 8
    $region21: #{tpu_custom_call.1} parent=1 // pred_fallthru
      _
    // Predicated region
    $region22: #{tpu_custom_call.1} parent=1 // pred_check
      _
    $region23: #{tpu_custom_call.1} parent=1 // pred_check_branch
      %47 = sbr.rel (0) target = $region25
    $region24: #{tpu_custom_call.1} parent=1 // pred_region
      _
    $region25: #{tpu_custom_call.1} parent=1 // pred_fallthru
      _
    // Predicated region
    $region26: #{tpu_custom_call.1} parent=1 // pred_check
      _
    $region27: #{tpu_custom_call.1} parent=1 // pred_check_branch
      %49 = sbr.rel (0) target = $region29
    $region28: #{tpu_custom_call.1} parent=1 // pred_region
      _
    $region29: #{tpu_custom_call.1} parent=1 // pred_fallthru
      _
    // Predicated region
    $region30: #{tpu_custom_call.1} parent=1 // pred_check
      _
    $region31: #{tpu_custom_call.1} parent=1 // pred_check_branch
      %51 = sbr.rel (0) target = $region33
    $region32: #{tpu_custom_call.1} parent=1 // pred_region
      _
    $region33: #{tpu_custom_call.1} parent=1 // pred_fallthru
      _
    // Predicated region
    $region34: #{tpu_custom_call.1} parent=1 // pred_check
      _
    $region35: #{tpu_custom_call.1} parent=1 // pred_check_branch
      %53 = sbr.rel (0) target = $region37
    $region36: #{tpu_custom_call.1} parent=1 // pred_region
      _
    $region37: #{tpu_custom_call.1} parent=1 // pred_fallthru
      _
    // Predicated region
    $region38: #{tpu_custom_call.1} parent=1 // pred_check
      _
    $region39: #{tpu_custom_call.1} parent=1 // pred_check_branch
      %55 = sbr.rel (0) target = $region41
    $region40: #{tpu_custom_call.1} parent=1 // pred_region
      _
    $region41: #{tpu_custom_call.1} parent=1 // pred_fallthru
      _
    // Predicated region
    $region42: #{tpu_custom_call.1} parent=1 // pred_check
      _
    $region43: #{tpu_custom_call.1} parent=1 // pred_check_branch
      %57 = sbr.rel (0) target = $region45
    $region44: #{tpu_custom_call.1} parent=1 // pred_region
      %58 = dma.done [#allocation3], 128
    $region45: #{tpu_custom_call.1} parent=1 // pred_fallthru
      _
    // Predicated region
    $region46: #{tpu_custom_call.1} parent=1 // pred_check
      _
    $region47: #{tpu_custom_call.1} parent=1 // pred_check_branch
      %60 = sbr.rel (0) target = $region49
    $region48: #{tpu_custom_call.1} parent=1 // pred_region
      %61 = dma.done [#allocation6], 512
    $region49: #{tpu_custom_call.1} parent=1 // pred_fallthru
      _
    %v62 = vld [vmem:[#allocation2] sm:$0xff]
    %v63 = vlaneseq
    %v64 = vand.u32 %v63, 127
    %vm65 = vcmp.ge.s32.totalorder %v64, 24
    %v66 = vmul.f32 %v62, 3.0
    %v67 = vtanh.pop %v66
    %v68 = vsel %vm65, %v67, %v62
    %v69 = vld [vmem:[%s1] sm:$0xff]
    %v70 = vld [vmem:[%s1 + $0x8] sm:$0xff]
    %v71 = vld [vmem:[%s1 + $0x10] sm:$0xff]
    %v72 = vld [vmem:[%s1 + $0x18] sm:$0xff]
    %v73 = vld [vmem:[%s2] sm:$0x1]
    %v75 = vlaneseq
    %v76 = vshrl.u32 %v75, 7
    %v77 = vsub.s32 0, %v76
    %v78 = vrot.slane %v73, %v77
    %vm80 = vcmask 261120
    %v82 = vsel %vm80, %v68, 0
    %84 = vmatprep.subr.mxu0 0.0
    %85 = vmatpush1.msra.mxu0 %v69
    %86 = vmatprep.subr.mxu0 0.0
    %87 = vmatpush1.msra.mxu0 %v70
    %88 = vmatprep.subr.mxu0 0.0
    %89 = vmatpush1.msra.mxu0 %v71
    %90 = vmatprep.subr.mxu0 0.0
    %91 = vmatpush1.msra.mxu0 %v72
    %92 = vmatprep.subr.mxu0 0.0
    %93 = vmatpush1.msra.mxu0 0.0
    %94 = vmatprep.subr.mxu0 0.0
    %95 = vmatpush1.msra.mxu0 0.0
    %96 = vmatprep.subr.mxu0 0.0
    %97 = vmatpush1.msra.mxu0 0.0
    %98 = vmatprep.subr.mxu0 0.0
    %99 = vmatpush1.msra.mxu0 0.0
    %100 = vmatprep.subr.mxu0 0.0
    %101 = vmatpush1.msra.mxu0 0.0
    %102 = vmatprep.subr.mxu0 0.0
    %103 = vmatpush1.msra.mxu0 0.0
    %104 = vmatprep.subr.mxu0 0.0
    %105 = vmatpush1.msra.mxu0 0.0
    %106 = vmatprep.subr.mxu0 0.0
    %107 = vmatpush1.msra.mxu0 0.0
    %108 = vmatprep.subr.mxu0 0.0
    %109 = vmatpush1.msra.mxu0 0.0
    %110 = vmatprep.subr.mxu0 0.0
    %111 = vmatpush1.msra.mxu0 0.0
    %112 = vmatprep.subr.mxu0 0.0
    %113 = vmatpush1.msra.mxu0 0.0
    %114 = vmatprep.subr.mxu0 0.0
    %115 = vmatpush1.msra.mxu0 0.0
    %116 = vmatprep.subr.mxu0 0.0
    %117 = vmatpush1.msra.mxu0 0.0
    %118 = vmatprep.subr.mxu0 0.0
    %119 = vmatpush1.msra.mxu0 0.0
    %120 = vmatprep.subr.mxu0 0.0
    %121 = vmatpush1.msra.mxu0 0.0
    %122 = vmatprep.subr.mxu0 0.0
    %123 = vmatpush1.msra.mxu0 0.0
    %124 = vmatprep.subr.mxu0 0.0
    %125 = vmatpush1.msra.mxu0 0.0
    %126 = vmatprep.subr.mxu0 0.0
    %127 = vmatpush1.msra.mxu0 0.0
    %128 = vmatprep.subr.mxu0 0.0
    %129 = vmatpush1.msra.mxu0 0.0
    %130 = vmatprep.subr.mxu0 0.0
    %131 = vmatpush1.msra.mxu0 0.0
    %132 = vmatprep.subr.mxu0 0.0
    %133 = vmatpush1.msra.mxu0 0.0
    %134 = vmatprep.subr.mxu0 0.0
    %135 = vmatpush1.msra.mxu0 0.0
    %136 = vmatprep.subr.mxu0 0.0
    %137 = vmatpush1.msra.mxu0 0.0
    %138 = vmatprep.subr.mxu0 0.0
    %139 = vmatpush1.msra.mxu0 0.0
    %140 = vmatprep.subr.mxu0 0.0
    %141 = vmatpush1.msra.mxu0 0.0
    %142 = vmatprep.subr.mxu0 0.0
    %143 = vmatpush1.msra.mxu0 0.0
    %144 = vmatprep.subr.mxu0 0.0
    %145 = vmatpush1.msra.mxu0 0.0
    %146 = vmatprep.subr.mxu0 0.0
    %147 = vmatpush1.msra.mxu0 0.0
    %148 = vmatprep.mubr.f32.mxu0 0.0
    %149 = vmatmul.mubr.f32.gmra.mrb[0].mxu0 %v82
    %v150 = vpop.f32.mrb[0].mxu0
    %v151 = vadd.f32 %v78, %v150
    %v152 = vpop.f32.mrb[0].mxu0
    %153 = vdwg.mxu0
    %v154 = vxor.u32 %v151, 2147483648
    %v155 = vmul.f32 %v154, 1.442695
    %v156 = vpow.pop %v155
    %v157 = vadd.f32 %v156, 1.0
    %v158 = vrcp.pop %v157
    %v159 = vmul.f32 1.0, %v158
    %v160 = vmul.f32 %v151, %v159
    %v161 = vld [vmem:[%s3] sm:$0xff]
    %v162 = vld [vmem:[%s3 + $0x8] sm:$0xff]
    %v163 = vld [vmem:[%s3 + $0x10] sm:$0xff]
    %v164 = vld [vmem:[%s3 + $0x18] sm:$0xff]
    %165 = vmatprep.subr.mxu0 0.0
    %166 = vmatpush1.msra.mxu0 %v161
    %167 = vmatprep.subr.mxu0 0.0
    %168 = vmatpush1.msra.mxu0 %v162
    %169 = vmatprep.subr.mxu0 0.0
    %170 = vmatpush1.msra.mxu0 %v163
    %171 = vmatprep.subr.mxu0 0.0
    %172 = vmatpush1.msra.mxu0 %v164
    %173 = vmatprep.subr.mxu0 0.0
    %174 = vmatpush1.msra.mxu0 0.0
    %175 = vmatprep.subr.mxu0 0.0
    %176 = vmatpush1.msra.mxu0 0.0
    %177 = vmatprep.subr.mxu0 0.0
    %178 = vmatpush1.msra.mxu0 0.0
    %179 = vmatprep.subr.mxu0 0.0
    %180 = vmatpush1.msra.mxu0 0.0
    %181 = vmatprep.subr.mxu0 0.0
    %182 = vmatpush1.msra.mxu0 0.0
    %183 = vmatprep.subr.mxu0 0.0
    %184 = vmatpush1.msra.mxu0 0.0
    %185 = vmatprep.subr.mxu0 0.0
    %186 = vmatpush1.msra.mxu0 0.0
    %187 = vmatprep.subr.mxu0 0.0
    %188 = vmatpush1.msra.mxu0 0.0
    %189 = vmatprep.subr.mxu0 0.0
    %190 = vmatpush1.msra.mxu0 0.0
    %191 = vmatprep.subr.mxu0 0.0
    %192 = vmatpush1.msra.mxu0 0.0
    %193 = vmatprep.subr.mxu0 0.0
    %194 = vmatpush1.msra.mxu0 0.0
    %195 = vmatprep.subr.mxu0 0.0
    %196 = vmatpush1.msra.mxu0 0.0
    %197 = vmatprep.subr.mxu0 0.0
    %198 = vmatpush1.msra.mxu0 0.0
    %199 = vmatprep.subr.mxu0 0.0
    %200 = vmatpush1.msra.mxu0 0.0
    %201 = vmatprep.subr.mxu0 0.0
    %202 = vmatpush1.msra.mxu0 0.0
    %203 = vmatprep.subr.mxu0 0.0
    %204 = vmatpush1.msra.mxu0 0.0
    %205 = vmatprep.subr.mxu0 0.0
    %206 = vmatpush1.msra.mxu0 0.0
    %207 = vmatprep.subr.mxu0 0.0
    %208 = vmatpush1.msra.mxu0 0.0
    %209 = vmatprep.subr.mxu0 0.0
    %210 = vmatpush1.msra.mxu0 0.0
    %211 = vmatprep.subr.mxu0 0.0
    %212 = vmatpush1.msra.mxu0 0.0
    %213 = vmatprep.subr.mxu0 0.0
    %214 = vmatpush1.msra.mxu0 0.0
    %215 = vmatprep.subr.mxu0 0.0
    %216 = vmatpush1.msra.mxu0 0.0
    %217 = vmatprep.subr.mxu0 0.0
    %218 = vmatpush1.msra.mxu0 0.0
    %219 = vmatprep.subr.mxu0 0.0
    %220 = vmatpush1.msra.mxu0 0.0
    %221 = vmatprep.subr.mxu0 0.0
    %222 = vmatpush1.msra.mxu0 0.0
    %223 = vmatprep.subr.mxu0 0.0
    %224 = vmatpush1.msra.mxu0 0.0
    %225 = vmatprep.subr.mxu0 0.0
    %226 = vmatpush1.msra.mxu0 0.0
    %227 = vmatprep.subr.mxu0 0.0
    %228 = vmatpush1.msra.mxu0 0.0
    %229 = vmatprep.mubr.f32.mxu0 0.0
    %230 = vmatmul.mubr.f32.gmra.mrb[0].mxu0 %v82
    %v231 = vpop.f32.mrb[0].mxu0
    %v232 = vadd.f32 0.0, %v231
    %v233 = vpop.f32.mrb[0].mxu0
    %234 = vdwg.mxu0
    %v235 = vld [vmem:[#allocation5] sm:$0xff]
    %v236 = vld [vmem:[#allocation5 + $0x8] sm:$0xff]
    %v237 = vld [vmem:[#allocation5 + $0x10] sm:$0xff]
    %v238 = vld [vmem:[#allocation5 + $0x18] sm:$0xff]
    %v240 = vsel %vm80, %v160, 0
    %242 = vmatprep.subr.mxu0 0.0
    %243 = vmatpush1.msra.mxu0 %v235
    %244 = vmatprep.subr.mxu0 0.0
    %245 = vmatpush1.msra.mxu0 %v236
    %246 = vmatprep.subr.mxu0 0.0
    %247 = vmatpush1.msra.mxu0 %v237
    %248 = vmatprep.subr.mxu0 0.0
    %249 = vmatpush1.msra.mxu0 %v238
    %250 = vmatprep.subr.mxu0 0.0
    %251 = vmatpush1.msra.mxu0 0.0
    %252 = vmatprep.subr.mxu0 0.0
    %253 = vmatpush1.msra.mxu0 0.0
    %254 = vmatprep.subr.mxu0 0.0
    %255 = vmatpush1.msra.mxu0 0.0
    %256 = vmatprep.subr.mxu0 0.0
    %257 = vmatpush1.msra.mxu0 0.0
    %258 = vmatprep.subr.mxu0 0.0
    %259 = vmatpush1.msra.mxu0 0.0
    %260 = vmatprep.subr.mxu0 0.0
    %261 = vmatpush1.msra.mxu0 0.0
    %262 = vmatprep.subr.mxu0 0.0
    %263 = vmatpush1.msra.mxu0 0.0
    %264 = vmatprep.subr.mxu0 0.0
    %265 = vmatpush1.msra.mxu0 0.0
    %266 = vmatprep.subr.mxu0 0.0
    %267 = vmatpush1.msra.mxu0 0.0
    %268 = vmatprep.subr.mxu0 0.0
    %269 = vmatpush1.msra.mxu0 0.0
    %270 = vmatprep.subr.mxu0 0.0
    %271 = vmatpush1.msra.mxu0 0.0
    %272 = vmatprep.subr.mxu0 0.0
    %273 = vmatpush1.msra.mxu0 0.0
    %274 = vmatprep.subr.mxu0 0.0
    %275 = vmatpush1.msra.mxu0 0.0
    %276 = vmatprep.subr.mxu0 0.0
    %277 = vmatpush1.msra.mxu0 0.0
    %278 = vmatprep.subr.mxu0 0.0
    %279 = vmatpush1.msra.mxu0 0.0
    %280 = vmatprep.subr.mxu0 0.0
    %281 = vmatpush1.msra.mxu0 0.0
    %282 = vmatprep.subr.mxu0 0.0
    %283 = vmatpush1.msra.mxu0 0.0
    %284 = vmatprep.subr.mxu0 0.0
    %285 = vmatpush1.msra.mxu0 0.0
    %286 = vmatprep.subr.mxu0 0.0
    %287 = vmatpush1.msra.mxu0 0.0
    %288 = vmatprep.subr.mxu0 0.0
    %289 = vmatpush1.msra.mxu0 0.0
    %290 = vmatprep.subr.mxu0 0.0
    %291 = vmatpush1.msra.mxu0 0.0
    %292 = vmatprep.subr.mxu0 0.0
    %293 = vmatpush1.msra.mxu0 0.0
    %294 = vmatprep.subr.mxu0 0.0
    %295 = vmatpush1.msra.mxu0 0.0
    %296 = vmatprep.subr.mxu0 0.0
    %297 = vmatpush1.msra.mxu0 0.0
    %298 = vmatprep.subr.mxu0 0.0
    %299 = vmatpush1.msra.mxu0 0.0
    %300 = vmatprep.subr.mxu0 0.0
    %301 = vmatpush1.msra.mxu0 0.0
    %302 = vmatprep.subr.mxu0 0.0
    %303 = vmatpush1.msra.mxu0 0.0
    %304 = vmatprep.subr.mxu0 0.0
    %305 = vmatpush1.msra.mxu0 0.0
    %306 = vmatprep.mubr.f32.mxu0 0.0
    %307 = vmatmul.mubr.f32.gmra.mrb[0].mxu0 %v240
    %v308 = vpop.f32.mrb[0].mxu0
    %v309 = vadd.f32 %v232, %v308
    %v310 = vpop.f32.mrb[0].mxu0
    %311 = vdwg.mxu0
    %v312 = vld [vmem:[%s5] sm:$0x1]
    %v314 = vlaneseq
    %v315 = vshrl.u32 %v314, 7
    %v316 = vsub.s32 0, %v315
    %v317 = vrot.slane %v312, %v316
    %v319 = vadd.f32 %v309, %v317
    %v320 = vxor.u32 %v319, 2147483648
    %v321 = vmul.f32 %v320, 1.442695
    %v322 = vpow.pop %v321
    %v323 = vadd.f32 %v322, 1.0
    %v324 = vrcp.pop %v323
    %v325 = vmul.f32 1.0, %v324
    %v326 = vmul.f32 %v319, %v325
    %v327 = vld [vmem:[%s6] sm:$0xff]
    %v328 = vld [vmem:[%s6 + $0x8] sm:$0xff]
    %v329 = vld [vmem:[%s6 + $0x10] sm:$0xff]
    %v330 = vld [vmem:[%s6 + $0x18] sm:$0xff]
    %v331 = vld [vmem:[%s7] sm:$0x1]
    %v333 = vlaneseq
    %v334 = vshrl.u32 %v333, 7
    %v335 = vsub.s32 0, %v334
    %v336 = vrot.slane %v331, %v335
    %v339 = vsel %vm80, %v326, 0
    %341 = vmatprep.subr.mxu0 0.0
    %342 = vmatpush1.msra.mxu0 %v327
    %343 = vmatprep.subr.mxu0 0.0
    %344 = vmatpush1.msra.mxu0 %v328
    %345 = vmatprep.subr.mxu0 0.0
    %346 = vmatpush1.msra.mxu0 %v329
    %347 = vmatprep.subr.mxu0 0.0
    %348 = vmatpush1.msra.mxu0 %v330
    %349 = vmatprep.subr.mxu0 0.0
    %350 = vmatpush1.msra.mxu0 0.0
    %351 = vmatprep.subr.mxu0 0.0
    %352 = vmatpush1.msra.mxu0 0.0
    %353 = vmatprep.subr.mxu0 0.0
    %354 = vmatpush1.msra.mxu0 0.0
    %355 = vmatprep.subr.mxu0 0.0
    %356 = vmatpush1.msra.mxu0 0.0
    %357 = vmatprep.subr.mxu0 0.0
    %358 = vmatpush1.msra.mxu0 0.0
    %359 = vmatprep.subr.mxu0 0.0
    %360 = vmatpush1.msra.mxu0 0.0
    %361 = vmatprep.subr.mxu0 0.0
    %362 = vmatpush1.msra.mxu0 0.0
    %363 = vmatprep.subr.mxu0 0.0
    %364 = vmatpush1.msra.mxu0 0.0
    %365 = vmatprep.subr.mxu0 0.0
    %366 = vmatpush1.msra.mxu0 0.0
    %367 = vmatprep.subr.mxu0 0.0
    %368 = vmatpush1.msra.mxu0 0.0
    %369 = vmatprep.subr.mxu0 0.0
    %370 = vmatpush1.msra.mxu0 0.0
    %371 = vmatprep.subr.mxu0 0.0
    %372 = vmatpush1.msra.mxu0 0.0
    %373 = vmatprep.subr.mxu0 0.0
    %374 = vmatpush1.msra.mxu0 0.0
    %375 = vmatprep.subr.mxu0 0.0
    %376 = vmatpush1.msra.mxu0 0.0
    %377 = vmatprep.subr.mxu0 0.0
    %378 = vmatpush1.msra.mxu0 0.0
    %379 = vmatprep.subr.mxu0 0.0
    %380 = vmatpush1.msra.mxu0 0.0
    %381 = vmatprep.subr.mxu0 0.0
    %382 = vmatpush1.msra.mxu0 0.0
    %383 = vmatprep.subr.mxu0 0.0
    %384 = vmatpush1.msra.mxu0 0.0
    %385 = vmatprep.subr.mxu0 0.0
    %386 = vmatpush1.msra.mxu0 0.0
    %387 = vmatprep.subr.mxu0 0.0
    %388 = vmatpush1.msra.mxu0 0.0
    %389 = vmatprep.subr.mxu0 0.0
    %390 = vmatpush1.msra.mxu0 0.0
    %391 = vmatprep.subr.mxu0 0.0
    %392 = vmatpush1.msra.mxu0 0.0
    %393 = vmatprep.subr.mxu0 0.0
    %394 = vmatpush1.msra.mxu0 0.0
    %395 = vmatprep.subr.mxu0 0.0
    %396 = vmatpush1.msra.mxu0 0.0
    %397 = vmatprep.subr.mxu0 0.0
    %398 = vmatpush1.msra.mxu0 0.0
    %399 = vmatprep.subr.mxu0 0.0
    %400 = vmatpush1.msra.mxu0 0.0
    %401 = vmatprep.subr.mxu0 0.0
    %402 = vmatpush1.msra.mxu0 0.0
    %403 = vmatprep.subr.mxu0 0.0
    %404 = vmatpush1.msra.mxu0 0.0
    %405 = vmatprep.mubr.f32.mxu0 0.0
    %406 = vmatmul.mubr.f32.gmra.mrb[0].mxu0 %v339
    %v407 = vpop.f32.mrb[0].mxu0
    %v408 = vadd.f32 %v336, %v407
    %v409 = vpop.f32.mrb[0].mxu0
    %410 = vdwg.mxu0
    %v411 = vxor.u32 %v408, 2147483648
    %v412 = vmul.f32 %v411, 1.442695
    %v413 = vpow.pop %v412
    %v414 = vadd.f32 %v413, 1.0
    %v415 = vrcp.pop %v414
    %v416 = vmul.f32 1.0, %v415
    %v417 = vmul.f32 %v408, %v416
    %v418 = vld [vmem:[%s8] sm:$0xff]
    %v419 = vld [vmem:[%s8 + $0x8] sm:$0xff]
    %v420 = vld [vmem:[%s9] sm:$0x1]
    %v422 = vlaneseq
    %v423 = vshrl.u32 %v422, 7
    %v424 = vsub.s32 0, %v423
    %v425 = vrot.slane %v420, %v424
    %vm427 = vcmask 130048
    %v429 = vsel %vm427, %v417, 0
    %431 = vmatprep.subr.mxu0 0.0
    %432 = vmatpush1.msra.mxu0 %v418
    %433 = vmatprep.subr.mxu0 0.0
    %434 = vmatpush1.msra.mxu0 %v419
    %435 = vmatprep.subr.mxu0 0.0
    %436 = vmatpush1.msra.mxu0 0.0
    %437 = vmatprep.subr.mxu0 0.0
    %438 = vmatpush1.msra.mxu0 0.0
    %439 = vmatprep.subr.mxu0 0.0
    %440 = vmatpush1.msra.mxu0 0.0
    %441 = vmatprep.subr.mxu0 0.0
    %442 = vmatpush1.msra.mxu0 0.0
    %443 = vmatprep.subr.mxu0 0.0
    %444 = vmatpush1.msra.mxu0 0.0
    %445 = vmatprep.subr.mxu0 0.0
    %446 = vmatpush1.msra.mxu0 0.0
    %447 = vmatprep.subr.mxu0 0.0
    %448 = vmatpush1.msra.mxu0 0.0
    %449 = vmatprep.subr.mxu0 0.0
    %450 = vmatpush1.msra.mxu0 0.0
    %451 = vmatprep.subr.mxu0 0.0
    %452 = vmatpush1.msra.mxu0 0.0
    %453 = vmatprep.subr.mxu0 0.0
    %454 = vmatpush1.msra.mxu0 0.0
    %455 = vmatprep.subr.mxu0 0.0
    %456 = vmatpush1.msra.mxu0 0.0
    %457 = vmatprep.subr.mxu0 0.0
    %458 = vmatpush1.msra.mxu0 0.0
    %459 = vmatprep.subr.mxu0 0.0
    %460 = vmatpush1.msra.mxu0 0.0
    %461 = vmatprep.subr.mxu0 0.0
    %462 = vmatpush1.msra.mxu0 0.0
    %463 = vmatprep.subr.mxu0 0.0
    %464 = vmatpush1.msra.mxu0 0.0
    %465 = vmatprep.subr.mxu0 0.0
    %466 = vmatpush1.msra.mxu0 0.0
    %467 = vmatprep.subr.mxu0 0.0
    %468 = vmatpush1.msra.mxu0 0.0
    %469 = vmatprep.subr.mxu0 0.0
    %470 = vmatpush1.msra.mxu0 0.0
    %471 = vmatprep.subr.mxu0 0.0
    %472 = vmatpush1.msra.mxu0 0.0
    %473 = vmatprep.subr.mxu0 0.0
    %474 = vmatpush1.msra.mxu0 0.0
    %475 = vmatprep.subr.mxu0 0.0
    %476 = vmatpush1.msra.mxu0 0.0
    %477 = vmatprep.subr.mxu0 0.0
    %478 = vmatpush1.msra.mxu0 0.0
    %479 = vmatprep.subr.mxu0 0.0
    %480 = vmatpush1.msra.mxu0 0.0
    %481 = vmatprep.subr.mxu0 0.0
    %482 = vmatpush1.msra.mxu0 0.0
    %483 = vmatprep.subr.mxu0 0.0
    %484 = vmatpush1.msra.mxu0 0.0
    %485 = vmatprep.subr.mxu0 0.0
    %486 = vmatpush1.msra.mxu0 0.0
    %487 = vmatprep.subr.mxu0 0.0
    %488 = vmatpush1.msra.mxu0 0.0
    %489 = vmatprep.subr.mxu0 0.0
    %490 = vmatpush1.msra.mxu0 0.0
    %491 = vmatprep.subr.mxu0 0.0
    %492 = vmatpush1.msra.mxu0 0.0
    %493 = vmatprep.subr.mxu0 0.0
    %494 = vmatpush1.msra.mxu0 0.0
    %495 = vmatprep.mubr.f32.mxu0 0.0
    %496 = vmatmul.mubr.f32.gmra.mrb[0].mxu0 %v429
    %v497 = vpop.f32.mrb[0].mxu0
    %v498 = vadd.f32 %v425, %v497
    %v499 = vpop.f32.mrb[0].mxu0
    %500 = vdwg.mxu0
    %vm501 = vcmask 48128
    %502 = vst.msk [vmem:[#allocation7] sm:$0xff] %vm501, %v498
    // Predicated region
    $region50: #{tpu_custom_call.1} parent=1 // pred_check
      _
    $region51: #{tpu_custom_call.1} parent=1 // pred_check_branch
      %504 = sbr.rel (0) target = $region53
    $region52: #{tpu_custom_call.1} parent=1 // pred_region
      %s506 = ssub.s32 128, 128
      %507 = vsyncadd [#allocation4], %s506
      %s509 = sshll.u32 [#allocation7], 4
      %s510 = int_to_ptr.vmem [resolvable:$true] %s509
      %512 = dma.vmem_to_hbm [thread:$0]  %s510, 128, %s10, [#allocation4]
    $region53: #{tpu_custom_call.1} parent=1 // pred_fallthru
      _
    // Predicated region
    $region54: #{tpu_custom_call.1} parent=1 // pred_check
      _
    $region55: #{tpu_custom_call.1} parent=1 // pred_check_branch
      %514 = sbr.rel (0) target = $region57
    $region56: #{tpu_custom_call.1} parent=1 // pred_region
      %515 = dma.done [#allocation4], 128
    $region57: #{tpu_custom_call.1} parent=1 // pred_fallthru
      _
    %516 = vsyncpa [#allocation3], 1
    %517 = vsyncpa [#allocation6], 1
    %518 = vsyncpa [#allocation4], 1

</llo_original>
